<compile_context>
chip_gen: v7x
topology: tpu7x:2x2x1
jax: 0.10.0
libtpu: 0.0.40
codegen_flags: <defaults>
</compile_context>

<pallas_src>
import functools

import jax
import jax.numpy as jnp
from jax import lax
from jax.experimental import pallas as pl
from jax.experimental.pallas import tpu as pltpu

EPS = 1e-9
GAMMA = 2

_LANE = 128
_ROWS = 8                      # f32 sublane tile; batch rows are split (not padded) to reach it
_STRIP = 512                   # preferred inner-strip width (4 f32 vregs)
_CHUNK_TARGET = 128 * 1024     # lanes per grid step -> 4 MiB f32 x-block at 8 rows
_SPLIT = 2                     # parallel split of the HW axis (feeds v7x's 2nd TensorCore)
_VMEM_LIMIT_BYTES = 32 * 1024 * 1024   # covers 2 inputs x 2 buffers x 4 MiB; < v7x's 64 MiB


def _round_up(a, m):
    return -(-a // m) * m


def _pick_row_split(B, HW):
    """Free reshape factor G: (B, HW) -> (B*G, HW//G) so the sublane dim B*G is a
    multiple of 8 without any padding (keeps per-row width >= 128 when possible)."""
    best = 1
    for g in (1, 2, 4, 8):
        if HW % g or (g > 1 and HW // g < _LANE):
            continue
        if (B * g) % _ROWS == 0:
            return g
        best = g
    return best


def _fold_to_lane(v, width):
    """Pairwise-tree fold of (rows, width) -> (rows, 128); width % 128 == 0."""
    parts = [v[:, i * _LANE:(i + 1) * _LANE] for i in range(width // _LANE)]
    while len(parts) > 1:
        mid = len(parts) // 2
        nxt = [parts[i] + parts[mid + i] for i in range(mid)]
        if len(parts) % 2:
            nxt[0] = nxt[0] + parts[-1]
        parts = nxt
    return parts[0]


def _focal_loss_kernel(x_ref, t_ref, out_ref, *, gamma, eps, strip, n_strips,
                       chunk, n_inner, valid_w, needs_mask):
    """Grid = (row blocks [parallel], HW half [parallel], chunks per half [arbitrary]).
    The (8, 128) output tile for (row block, half) stays resident across the chunk
    axis and accumulates per-lane partial sums of the loss."""
    o = pl.program_id(1)
    c = pl.program_id(2)

    @pl.when(c == 0)
    def _():
        out_ref[...] = jnp.zeros_like(out_ref)

    rows = x_ref.shape[0]
    if needs_mask:
        # Global column of lane j in strip k is (o*n_inner + c)*chunk + k*strip + j.
        lane = lax.broadcasted_iota(jnp.int32, (rows, strip), 1)
        rem0 = valid_w - (o * n_inner + c) * chunk        # <= 0 for phantom blocks

    def body(k, acc):
        start = k * strip
        if not isinstance(start, int):
            start = pl.multiple_of(start, strip)
        x = x_ref[:, pl.ds(start, strip)]
        t = t_ref[:, pl.ds(start, strip)]
        # Single-log focal loss (exact for binary {0,1} targets):
        #   t == 1: -(1-x)^g * log(x + eps);   t == 0: -x^g * log(1-x + eps)
        p = jnp.where(t > 0.5, x, 1.0 - x)
        omp = 1.0 - p
        w = omp * omp if gamma == 2 else omp ** gamma     # static python-int power
        pos = w * jnp.log(p + eps)                        # sign folded into final subtract
        if needs_mask:
            pos = jnp.where(lane < rem0 - k * strip, pos, 0.0)
        return acc + _fold_to_lane(pos, strip)

    acc = jnp.zeros((rows, _LANE), jnp.float32)
    if n_strips <= 8:
        for k in range(n_strips):
            acc = body(k, acc)
    else:
        unroll = 1
        for u in (8, 4, 2):
            if n_strips % u == 0:
                unroll = u
                break
        acc = lax.fori_loop(0, n_strips, body, acc, unroll=unroll)

    out_ref[...] = out_ref[...] - acc


def focal_loss(input_b1hw, target_bhw, pointmap=None, n_objects=None,
               batch_mean=True, gamma=GAMMA, eps=EPS):
    # pointmap / n_objects are unused by the reference forward pass.
    assert isinstance(gamma, int) and gamma >= 1, "gamma must be a static python int >= 1"

    x = jnp.squeeze(input_b1hw, axis=1)            # (B, H, W)
    B, H, W = x.shape
    HW = H * W

    # Free row-split: (B, HW) -> (rows, w2) with rows = B*G (no padding, no copies).
    G = _pick_row_split(B, HW)
    rows = B * G
    w2 = HW // G
    x = x.reshape(rows, w2).astype(jnp.float32)
    t = target_bhw.reshape(rows, w2).astype(jnp.float32)   # native f32, no in-kernel cast

    # Lane tiling: each of the _SPLIT halves of a row is covered by n_inner chunks.
    half = pl.cdiv(w2, _SPLIT)
    chunk = min(_CHUNK_TARGET, _round_up(half, _LANE))
    strip = _LANE
    for s in (512, 384, 256, 128):
        if chunk % s == 0:
            strip = s
            break
    n_strips = chunk // strip
    n_inner = pl.cdiv(half, chunk)
    needs_mask = (_SPLIT * n_inner * chunk) != w2
    max_c = pl.cdiv(w2, chunk) - 1                 # last chunk index holding real data

    grid_b = pl.cdiv(rows, _ROWS)
    rows_p = grid_b * _ROWS                        # output rows only (inputs NOT padded)

    def in_map(i, o, c):
        # Phantom trailing chunks are clamped onto the last real chunk; their
        # contribution is masked to zero inside the kernel.
        return (i, jnp.minimum(o * n_inner + c, max_c))

    def out_map(i, o, c):
        return (i, o)

    n_elems = B * HW
    cost = pl.CostEstimate(flops=8 * n_elems, transcendentals=n_elems,
                           bytes_accessed=8 * n_elems + rows_p * _SPLIT * _LANE * 4)

    kernel = functools.partial(
        _focal_loss_kernel, gamma=gamma, eps=float(eps), strip=strip,
        n_strips=n_strips, chunk=chunk, n_inner=n_inner, valid_w=w2,
        needs_mask=needs_mask)

    out = pl.pallas_call(
        kernel,
        out_shape=jax.ShapeDtypeStruct((rows_p, _SPLIT * _LANE), jnp.float32),
        grid_spec=pltpu.PrefetchScalarGridSpec(
            num_scalar_prefetch=0,
            grid=(grid_b, _SPLIT, n_inner),
            in_specs=[pl.BlockSpec((_ROWS, chunk), in_map),
                      pl.BlockSpec((_ROWS, chunk), in_map)],
            out_specs=pl.BlockSpec((_ROWS, _LANE), out_map),
        ),
        compiler_params=pltpu.CompilerParams(
            dimension_semantics=("parallel", "parallel", "arbitrary"),
            vmem_limit_bytes=_VMEM_LIMIT_BYTES),
        cost_estimate=cost,
    )(x, t)

    per_row = out[:rows].sum(axis=-1)              # tiny (rows, 256) reduce: plain-JAX glue
    per_batch = per_row.reshape(B, G).sum(axis=-1)
    if batch_mean:
        return jnp.mean(per_batch)
    return per_batch


def _reference(input_b1hw, target_bhw, gamma=GAMMA, eps=EPS):
    """Pure-JAX port of the original two-term PyTorch forward (f32)."""
    xs = jnp.squeeze(input_b1hw, axis=1).astype(jnp.float32)
    t = target_bhw.astype(jnp.float32)
    loss = (-t * (1.0 - xs) ** gamma * jnp.log(xs + eps)
            - (1.0 - t) * xs ** gamma * jnp.log(1.0 - xs + eps))
    return loss.sum(axis=(1, 2))


if __name__ == "__main__":
    key = jax.random.PRNGKey(0)

    # --- test 1: module-typical small shape, batch_mean=True --------------------
    k1, k2 = jax.random.split(key)
    B, H, W = 2, 16, 16
    x = jax.random.uniform(k1, (B, 1, H, W), jnp.float32, minval=0.01, maxval=0.99)
    t = jax.random.bernoulli(k2, 0.3, (B, H, W)).astype(jnp.float32)
    pointmap = jnp.zeros((B, H, W), jnp.float32)     # unused by the forward
    n_objects = jnp.ones((B,), jnp.int32)            # unused by the forward

    out = jax.block_until_ready(focal_loss(x, t, pointmap, n_objects, batch_mean=True))
    ref = _reference(x, t).mean()
    assert jnp.allclose(out, ref, rtol=1e-4, atol=1e-3), (out, ref)

    # --- test 2: odd shapes (ragged rows + ragged HW tail), batch_mean=False ----
    k3, k4 = jax.random.split(k2)
    B2, H2, W2 = 3, 17, 19
    x2 = jax.random.uniform(k3, (B2, 1, H2, W2), jnp.float32, minval=0.01, maxval=0.99)
    t2 = jax.random.bernoulli(k4, 0.5, (B2, H2, W2)).astype(jnp.float32)

    out2 = jax.block_until_ready(focal_loss(x2, t2, batch_mean=False))
    ref2 = _reference(x2, t2)
    assert out2.shape == (B2,)
    assert jnp.allclose(out2, ref2, rtol=1e-4, atol=1e-3), (out2, ref2)

    # --- test 3: larger aligned shape (exercises no-mask + fori_loop strip path) -
    k5, k6 = jax.random.split(k4)
    B3, H3, W3 = 2, 256, 256
    x3 = jax.random.uniform(k5, (B3, 1, H3, W3), jnp.float32, minval=0.01, maxval=0.99)
    t3 = jax.random.bernoulli(k6, 0.1, (B3, H3, W3)).astype(jnp.float32)

    out3 = jax.block_until_ready(focal_loss(x3, t3, batch_mean=True))
    ref3 = _reference(x3, t3).mean()
    assert jnp.allclose(out3, ref3, rtol=1e-4, atol=1e-2), (out3, ref3)

    print("KERNEL_OK")
</pallas_src>

<mosaic_0001>
module attributes {stable_mosaic.version = 11 : i64} {
  func.func @_focal_loss_kernel(%arg0: i32, %arg1: i32, %arg2: i32, %arg3: memref<8x128xf32, #tpu.memory_space<vmem>>, %arg4: memref<8x128xf32, #tpu.memory_space<vmem>>, %arg5: memref<8x128xf32, #tpu.memory_space<vmem>>) attributes {dimension_semantics = [#tpu.dimension_semantics<parallel>, #tpu.dimension_semantics<parallel>, #tpu.dimension_semantics<arbitrary>], iteration_bounds = array<i64: 1, 2, 1>, scalar_prefetch = 0 : i64, scratch_operands = 0 : i64, tpu.core_type = #tpu.core_type<tc>, window_params = [{transform_indices = @transform_0, window_bounds = array<i64: 8, 128>}, {transform_indices = @transform_1, window_bounds = array<i64: 8, 128>}, {transform_indices = @transform_2, window_bounds = array<i64: 8, 128>}]} {
    %c0_i32 = arith.constant 0 : i32
    %0 = arith.cmpi eq, %arg2, %c0_i32 : i32
    %1 = arith.extui %0 : i1 to i32
    %c0_i32_0 = arith.constant 0 : i32
    %2 = arith.cmpi ne, %1, %c0_i32_0 : i32
    scf.if %2 {
      %cst_15 = arith.constant 0.000000e+00 : f32
      %32 = vector.broadcast %cst_15 : f32 to vector<8x128xf32>
      %c0_16 = arith.constant 0 : index
      %c0_17 = arith.constant 0 : index
      %33 = vector.load %arg5[%c0_16, %c0_17] : memref<8x128xf32, #tpu.memory_space<vmem>>, vector<8x128xf32>
      tpu.vector_store %arg5[%c0_16, %c0_17], %32 {strides = array<i32>} : memref<8x128xf32, #tpu.memory_space<vmem>>, vector<8x128xf32>,
    } else {
    }
    %3 = tpu.iota {dimensions = array<i32: 1>} : vector<8x128xi32>
    %c1_i32 = arith.constant 1 : i32
    %4 = arith.muli %arg1, %c1_i32 : i32
    %5 = arith.addi %4, %arg2 : i32
    %c128_i32 = arith.constant 128 : i32
    %6 = arith.muli %5, %c128_i32 : i32
    %c128_i32_1 = arith.constant 128 : i32
    %7 = arith.subi %c128_i32_1, %6 : i32
    %cst = arith.constant 0.000000e+00 : f32
    %8 = vector.broadcast %cst : f32 to vector<8x128xf32>
    %c0 = arith.constant 0 : index
    %c0_2 = arith.constant 0 : index
    %9 = vector.load %arg3[%c0, %c0_2] : memref<8x128xf32, #tpu.memory_space<vmem>>, vector<8x128xf32>
    %c0_3 = arith.constant 0 : index
    %c0_4 = arith.constant 0 : index
    %10 = vector.load %arg4[%c0_3, %c0_4] : memref<8x128xf32, #tpu.memory_space<vmem>>, vector<8x128xf32>
    %cst_5 = arith.constant 5.000000e-01 : f32
    %11 = vector.broadcast %cst_5 : f32 to vector<8x128xf32>
    %12 = arith.cmpf ogt, %10, %11 : vector<8x128xf32>
    %cst_6 = arith.constant 1.000000e+00 : f32
    %13 = vector.broadcast %cst_6 : f32 to vector<8x128xf32>
    %14 = arith.subf %13, %9 : vector<8x128xf32>
    %15 = arith.select %12, %9, %14 : vector<8x128xi1>, vector<8x128xf32>
    %cst_7 = arith.constant 1.000000e+00 : f32
    %16 = vector.broadcast %cst_7 : f32 to vector<8x128xf32>
    %17 = arith.subf %16, %15 : vector<8x128xf32>
    %18 = arith.mulf %17, %17 : vector<8x128xf32>
    %cst_8 = arith.constant 9.99999971E-10 : f32
    %19 = vector.broadcast %cst_8 : f32 to vector<8x128xf32>
    %20 = arith.addf %15, %19 : vector<8x128xf32>
    %21 = math.log %20 : vector<8x128xf32>
    %22 = arith.mulf %18, %21 : vector<8x128xf32>
    %c0_i32_9 = arith.constant 0 : i32
    %23 = arith.subi %7, %c0_i32_9 : i32
    %24 = vector.broadcast %23 : i32 to vector<8x128xi32>
    %25 = arith.cmpi slt, %3, %24 : vector<8x128xi32>
    %cst_10 = arith.constant 0.000000e+00 : f32
    %26 = vector.broadcast %cst_10 : f32 to vector<8x128xf32>
    %27 = arith.select %25, %22, %26 : vector<8x128xi1>, vector<8x128xf32>
    %28 = arith.addf %8, %27 : vector<8x128xf32>
    %c0_11 = arith.constant 0 : index
    %c0_12 = arith.constant 0 : index
    %29 = vector.load %arg5[%c0_11, %c0_12] : memref<8x128xf32, #tpu.memory_space<vmem>>, vector<8x128xf32>
    %30 = arith.subf %29, %28 : vector<8x128xf32>
    %c0_13 = arith.constant 0 : index
    %c0_14 = arith.constant 0 : index
    %31 = vector.load %arg5[%c0_13, %c0_14] : memref<8x128xf32, #tpu.memory_space<vmem>>, vector<8x128xf32>
    tpu.vector_store %arg5[%c0_13, %c0_14], %30 {strides = array<i32>} : memref<8x128xf32, #tpu.memory_space<vmem>>, vector<8x128xf32>,
    return
  }
  func.func @transform_0(%arg0: i32, %arg1: i32, %arg2: i32) -> (i32, i32) {
    %c1_i32 = arith.constant 1 : i32
    %0 = arith.muli %arg1, %c1_i32 : i32
    %1 = arith.addi %0, %arg2 : i32
    %c0_i32 = arith.constant 0 : i32
    %2 = arith.minsi %1, %c0_i32 : i32
    %c0_i32_0 = arith.constant 0 : i32
    return %arg0, %2 : i32, i32
  }
  func.func @transform_1(%arg0: i32, %arg1: i32, %arg2: i32) -> (i32, i32) {
    %c1_i32 = arith.constant 1 : i32
    %0 = arith.muli %arg1, %c1_i32 : i32
    %1 = arith.addi %0, %arg2 : i32
    %c0_i32 = arith.constant 0 : i32
    %2 = arith.minsi %1, %c0_i32 : i32
    %c0_i32_0 = arith.constant 0 : i32
    return %arg0, %2 : i32, i32
  }
  func.func @transform_2(%arg0: i32, %arg1: i32, %arg2: i32) -> (i32, i32) {
    %c0_i32 = arith.constant 0 : i32
    return %arg0, %arg1 : i32, i32
  }
}

</mosaic_0001>

<llo_original>
// kernel: tpu_custom_call.1
$region0: #{tpu_custom_call.1}
  #allocation0 [shape = 'u32[]', space=smem, size = 0x4, offset = 0x4, fixed_abs, tag = 'smem constant byte address 0x4 - core index']
  #allocation1 [shape = 'u32[144,128]{1,0:T(1,128)}', space=vmem, size = 0x12000, scoped, tag = 'internal scratch']
  %s0 = inlined_call_operand.hbm [shape: f32[4,128], index: 0, kind: input, shape index: {}]
  %s1 = inlined_call_operand.hbm [shape: f32[4,128], index: 1, kind: input, shape index: {}]
  %s2 = inlined_call_operand.hbm [shape: f32[8,256], index: 2, kind: output, shape index: {}]
  %s3 = sld [smem:[#allocation0]]
  $region53: #{tpu_custom_call.1} parent=0
    _
  %s5 = ssub.s32 1, %s3
  %s6 = scalar_select 0, %s5, %s3
  $region1: #{tpu_custom_call.1} parent=0
    #allocation2 [shape = 'u8[8192]{0}', space=vmem, size = 0x2000, scoped, tag = 'input window, operand 0']
    #allocation3 [shape = 's32[2]{0}', space=sflag, size = 0x8, scoped, tag = 'scoped memory for tpu_custom_call.1']
    #allocation4 [shape = 's32[2]{0}', space=sflag, size = 0x8, scoped, tag = 'scoped memory for tpu_custom_call.1']
    #allocation5 [shape = 'u8[8192]{0}', space=vmem, size = 0x2000, scoped, tag = 'input window, operand 1']
    #allocation6 [shape = 's32[2]{0}', space=sflag, size = 0x8, scoped, tag = 'scoped memory for tpu_custom_call.1']
    #allocation7 [shape = 'u8[8192]{0}', space=vmem, size = 0x2000, scoped, tag = 'output window, operand 0']
    %7 = vsyncpa [#allocation3], 0
    %s8 = scalar_lea.sflag [#allocation3], 1
    %9 = vsyncpa %s8, 0
    %10 = vsyncpa [#allocation6], 0
    %s11 = scalar_lea.sflag [#allocation6], 1
    %12 = vsyncpa %s11, 0
    %13 = vsyncpa [#allocation4], 0
    %s14 = scalar_lea.sflag [#allocation4], 1
    %15 = vsyncpa %s14, 0
    loop: start=0, step=1, limit=4
    $region2: #{tpu_custom_call.1} parent=1 // loop_pre_header
      _
    $region3: #{tpu_custom_call.1} parent=1 // loop_header
      %s17 = sphi 0, %s21
      %p18 = scmp.ge.s32.totalorder %s17, 4
      %s24 = sphi 0, %s43
      %s25 = sphi 0, %s39
      %s26 = sphi 0, %s35
      %s27 = sphi 0, %s24
      %s28 = sphi 0, %s25
      %s29 = sphi 0, %s26
      %s30 = sphi 0, %s27
      %s31 = sphi 0, %s28
      %s32 = sphi 0, %s29
      %s54 = sphi 0, %s56
      %s57 = sphi 0, %s54
      %s58 = sphi 0, %s57
      %s74 = sphi 0, %s58
      %s88 = sphi 0, %s90
      %s91 = sphi 0, %s88
      %s92 = sphi 0, %s91
      %s108 = sphi 0, %s92
      %s116 = sphi 0, %s118
      %s119 = sphi 0, %s116
      %s120 = sphi 0, %s119
      %s136 = sphi 0, %s120
    $region4: #{tpu_custom_call.1} parent=1 // loop_header_branch
      %20 = sbr.rel (%p18) target = $region8
    $region5: #{tpu_custom_call.1} parent=1 // loop_body
      %s22 = ssub.s32 %s17, 1
      %s23 = ssub.s32 %s17, 2
      %s33 = sadd.s32 1, %s26
      %p34 = scmp.ge.s32.totalorder %s33, 1
      %s35 = scalar_select %p34, 0, %s33
      %s36 = sadd.s32 1, %s25
      %s37 = scalar_select %p34, %s36, %s25
      %p38 = scmp.ge.s32.totalorder %s37, 2
      %s39 = scalar_select %p38, 0, %s37
      %s40 = sadd.s32 1, %s24
      %s41 = scalar_select %p38, %s40, %s24
      %p42 = scmp.ge.s32.totalorder %s41, 1
      %s43 = scalar_select %p42, 0, %s41
      %s44 = sadd.s32 %s25, %s26
      %p45 = scmp.lt.s32.totalorder %s44, 0
      %s46 = scalar_select %p45, %s44, 0
      %s47 = sadd.s32 %s39, %s35
      %p48 = scmp.lt.s32.totalorder %s47, 0
      %s49 = scalar_select %p48, %s47, 0
      %s50 = ssub.s32 %s24, %s43
      %s51 = ssub.s32 %s46, %s49
      %s52 = sor.u32 %s50, %s51
      %p53 = scmp.eq.s32.totalorder %s52, 0
      %s55 = sadd.s32 %s54, 1
      %s56 = scalar_select %p53, %s54, %s55
      %p59 = pneg %p53
      %p60 = scmp.eq.s32.totalorder %s17, 1
      %p61 = por %p59, %p60
      %p62 = scmp.ne.s32.totalorder %s54, %s57
      %p63 = scmp.eq.s32.totalorder %s17, 0
      %p64 = por %p62, %p63
      %p65 = scmp.ne.s32.totalorder %s54, %s57
      %p66 = scmp.eq.s32.totalorder %s22, 1
      %p67 = por %p65, %p66
      %p68 = scmp.ne.s32.totalorder %s57, %s58
      %p69 = scmp.eq.s32.totalorder %s22, 0
      %p70 = por %p68, %p69
      %p71 = scmp.ne.s32.totalorder %s57, %s58
      %p72 = scmp.eq.s32.totalorder %s23, 1
      %p73 = por %p71, %p72
      %p75 = scmp.ne.s32.totalorder %s58, %s74
      %p76 = scmp.eq.s32.totalorder %s23, 0
      %p77 = por %p75, %p76
      %s78 = sadd.s32 %s25, %s26
      %p79 = scmp.lt.s32.totalorder %s78, 0
      %s80 = scalar_select %p79, %s78, 0
      %s81 = sadd.s32 %s39, %s35
      %p82 = scmp.lt.s32.totalorder %s81, 0
      %s83 = scalar_select %p82, %s81, 0
      %s84 = ssub.s32 %s24, %s43
      %s85 = ssub.s32 %s80, %s83
      %s86 = sor.u32 %s84, %s85
      %p87 = scmp.eq.s32.totalorder %s86, 0
      %s89 = sadd.s32 %s88, 1
      %s90 = scalar_select %p87, %s88, %s89
      %p93 = pneg %p87
      %p94 = scmp.eq.s32.totalorder %s17, 1
      %p95 = por %p93, %p94
      %p96 = scmp.ne.s32.totalorder %s88, %s91
      %p97 = scmp.eq.s32.totalorder %s17, 0
      %p98 = por %p96, %p97
      %p99 = scmp.ne.s32.totalorder %s88, %s91
      %p100 = scmp.eq.s32.totalorder %s22, 1
      %p101 = por %p99, %p100
      %p102 = scmp.ne.s32.totalorder %s91, %s92
      %p103 = scmp.eq.s32.totalorder %s22, 0
      %p104 = por %p102, %p103
      %p105 = scmp.ne.s32.totalorder %s91, %s92
      %p106 = scmp.eq.s32.totalorder %s23, 1
      %p107 = por %p105, %p106
      %p109 = scmp.ne.s32.totalorder %s92, %s108
      %p110 = scmp.eq.s32.totalorder %s23, 0
      %p111 = por %p109, %p110
      %s112 = ssub.s32 %s24, %s43
      %s113 = ssub.s32 %s25, %s39
      %s114 = sor.u32 %s112, %s113
      %p115 = scmp.eq.s32.totalorder %s114, 0
      %s117 = sadd.s32 %s116, 1
      %s118 = scalar_select %p115, %s116, %s117
      %p121 = pneg %p115
      %p122 = scmp.eq.s32.totalorder %s17, 1
      %p123 = por %p121, %p122
      %p124 = scmp.ne.s32.totalorder %s116, %s119
      %p125 = scmp.eq.s32.totalorder %s17, 0
      %p126 = por %p124, %p125
      %p127 = scmp.ne.s32.totalorder %s116, %s119
      %p128 = scmp.eq.s32.totalorder %s22, 1
      %p129 = por %p127, %p128
      %p130 = scmp.ne.s32.totalorder %s119, %s120
      %p131 = scmp.eq.s32.totalorder %s22, 0
      %p132 = por %p130, %p131
      %p133 = scmp.ne.s32.totalorder %s119, %s120
      %p134 = scmp.eq.s32.totalorder %s23, 1
      %p135 = por %p133, %p134
      %p137 = scmp.ne.s32.totalorder %s120, %s136
      %p138 = scmp.eq.s32.totalorder %s23, 0
      %p139 = por %p137, %p138
      %p140 = scmp.le.s32.totalorder 1, %s17
      %p141 = scmp.lt.s32.totalorder %s17, 3
      %p142 = pnand %p140, %p141
      %p143 = pneg %p142
      // Predicated region
      $region9: #{tpu_custom_call.1} parent=5 // pred_check
        _
      $region10: #{tpu_custom_call.1} parent=5 // pred_check_branch
        %145 = sbr.rel (%p142) target = $region12
      $region11: #{tpu_custom_call.1} parent=5 // pred_region
        %s146 = ssub.s32 %s17, 1
      $region12: #{tpu_custom_call.1} parent=5 // pred_fallthru
        _
      %p147 = scmp.lt.s32.totalorder %s17, 2
      // Predicated region
      $region13: #{tpu_custom_call.1} parent=5 // pred_check
        %p148 = pneg %p147
      $region14: #{tpu_custom_call.1} parent=5 // pred_check_branch
        %150 = sbr.rel (%p148) target = $region16
      $region15: #{tpu_custom_call.1} parent=5 // pred_region
        // Predicated region
        $region17: #{tpu_custom_call.1} parent=15 // pred_check
          %p151 = pneg %p64
        $region18: #{tpu_custom_call.1} parent=15 // pred_check_branch
          %153 = sbr.rel (%p151) target = $region20
        $region19: #{tpu_custom_call.1} parent=15 // pred_region
          %s154 = sand.u32 %s54, 1
          %s155 = scalar_lea.sflag [#allocation3], %s154
          %s156 = sand.u32 %s54, 1
          %s157 = smul.addr %s156, 8
          %s158 = scalar_lea.vmem [#allocation2], %s157
          %s159 = sadd.s32 %s25, %s26
          %p160 = scmp.lt.s32.totalorder %s159, 0
          %s161 = scalar_select %p160, %s159, 0
          %s162 = smul.u32 2, %s24
          %s163 = ssub.s32 1, %s162
          %s164 = smul.u32 64, %s163
          %s166 = ssub.s32 128, %s164
          %167 = vsyncadd %s155, %s166
          %p168 = scmp.ne.s32.totalorder 0, %s164
          %s169 = sadd.s32 %s161, %s162
          %s170 = smul.addr %s169, 64
          %s171 = scalar_lea.hbm %s0, %s170
          %s172 = smul.u32 4, %s163
          %s173 = sshll.u32 %s158, 4
          %s174 = int_to_ptr.vmem [resolvable:$true] %s173
          %s175 = sshll.u32 %s172, 4
          %179 = dma.hbm_to_vmem [thread:$0]  (%p168), %s171, %s175, %s174, %s155, 64, 64, 4
        $region20: #{tpu_custom_call.1} parent=15 // pred_fallthru
          _
        // Predicated region
        $region21: #{tpu_custom_call.1} parent=15 // pred_check
          %p180 = pneg %p98
        $region22: #{tpu_custom_call.1} parent=15 // pred_check_branch
          %182 = sbr.rel (%p180) target = $region24
        $region23: #{tpu_custom_call.1} parent=15 // pred_region
          %s183 = sand.u32 %s88, 1
          %s184 = scalar_lea.sflag [#allocation6], %s183
          %s185 = sand.u32 %s88, 1
          %s186 = smul.addr %s185, 8
          %s187 = scalar_lea.vmem [#allocation5], %s186
          %s188 = sadd.s32 %s25, %s26
          %p189 = scmp.lt.s32.totalorder %s188, 0
          %s190 = scalar_select %p189, %s188, 0
          %s191 = smul.u32 2, %s24
          %s192 = ssub.s32 1, %s191
          %s193 = smul.u32 64, %s192
          %s195 = ssub.s32 128, %s193
          %196 = vsyncadd %s184, %s195
          %p197 = scmp.ne.s32.totalorder 0, %s193
          %s198 = sadd.s32 %s190, %s191
          %s199 = smul.addr %s198, 64
          %s200 = scalar_lea.hbm %s1, %s199
          %s201 = smul.u32 4, %s192
          %s202 = sshll.u32 %s187, 4
          %s203 = int_to_ptr.vmem [resolvable:$true] %s202
          %s204 = sshll.u32 %s201, 4
          %208 = dma.hbm_to_vmem [thread:$0]  (%p197), %s200, %s204, %s203, %s184, 64, 64, 4
        $region24: #{tpu_custom_call.1} parent=15 // pred_fallthru
          _
      $region16: #{tpu_custom_call.1} parent=5 // pred_fallthru
        _
      %p209 = scmp.le.s32.totalorder 1, %s17
      %p210 = scmp.lt.s32.totalorder %s17, 3
      %p211 = pnand %p209, %p210
      %p212 = pneg %p211
      // Predicated region
      $region25: #{tpu_custom_call.1} parent=5 // pred_check
        _
      $region26: #{tpu_custom_call.1} parent=5 // pred_check_branch
        %214 = sbr.rel (%p211) target = $region28
      $region27: #{tpu_custom_call.1} parent=5 // pred_region
        %s215 = ssub.s32 %s17, 1
        %s216 = sand.u32 %s57, 1
        %s217 = scalar_lea.sflag [#allocation3], %s216
        %s218 = sand.u32 %s57, 1
        %s219 = smul.addr %s218, 8
        %s220 = scalar_lea.vmem [#allocation2], %s219
        // Predicated region
        $region29: #{tpu_custom_call.1} parent=27 // pred_check
          %p221 = pneg %p70
        $region30: #{tpu_custom_call.1} parent=27 // pred_check_branch
          %223 = sbr.rel (%p221) target = $region32
        $region31: #{tpu_custom_call.1} parent=27 // pred_region
          %224 = dma.done %s217, 128
        $region32: #{tpu_custom_call.1} parent=27 // pred_fallthru
          _
        %s225 = sand.u32 %s91, 1
        %s226 = scalar_lea.sflag [#allocation6], %s225
        %s227 = sand.u32 %s91, 1
        %s228 = smul.addr %s227, 8
        %s229 = scalar_lea.vmem [#allocation5], %s228
        // Predicated region
        $region33: #{tpu_custom_call.1} parent=27 // pred_check
          %p230 = pneg %p104
        $region34: #{tpu_custom_call.1} parent=27 // pred_check_branch
          %232 = sbr.rel (%p230) target = $region36
        $region35: #{tpu_custom_call.1} parent=27 // pred_region
          %233 = dma.done %s226, 128
        $region36: #{tpu_custom_call.1} parent=27 // pred_fallthru
          _
        %s234 = sand.u32 %s57, 1
        %s235 = scalar_lea.sflag [#allocation3], %s234
        %s236 = sand.u32 %s57, 1
        %s237 = smul.addr %s236, 8
        %s238 = scalar_lea.vmem [#allocation2], %s237
        %p239 = pneg %p70
        %p240 = pneg %p67
        %s241 = sand.u32 %s91, 1
        %s242 = scalar_lea.sflag [#allocation6], %s241
        %s243 = sand.u32 %s91, 1
        %s244 = smul.addr %s243, 8
        %s245 = scalar_lea.vmem [#allocation5], %s244
        %p246 = pneg %p104
        %p247 = pneg %p101
        %p248 = pneg %p132
        %p249 = pneg %p129
        %s250 = sand.u32 %s119, 1
        %s251 = scalar_lea.sflag [#allocation4], %s250
        %s252 = sand.u32 %s119, 1
        %s253 = smul.addr %s252, 8
        %s254 = scalar_lea.vmem [#allocation7], %s253
        %s255 = sadd.s32 %s28, %s29
        %p256 = scmp.lt.s32.totalorder %s255, 0
        %s257 = scalar_select %p256, %s255, 0
        %s258 = smul.u32 2, %s27
        %s259 = ssub.s32 1, %s258
        %s260 = smul.u32 64, %s259
        %s261 = sadd.s32 %s28, %s29
        %p262 = scmp.lt.s32.totalorder %s261, 0
        %s263 = scalar_select %p262, %s261, 0
        %s264 = smul.u32 2, %s27
        %s265 = ssub.s32 1, %s264
        %s266 = smul.u32 64, %s265
        %p267 = scmp.eq.s32.totalorder %s29, 0
        // Predicated region
        $region37: #{tpu_custom_call.1} parent=27 // pred_check
          %p268 = pneg %p267
        $region38: #{tpu_custom_call.1} parent=27 // pred_check_branch
          %270 = sbr.rel (%p268) target = $region40
        $region39: #{tpu_custom_call.1} parent=27 // pred_region
          %271 = vst [vmem:[%s254] sm:$0xff] 0.0
        $region40: #{tpu_custom_call.1} parent=27 // pred_fallthru
          _
        %v272 = vlaneseq
        %v273 = vand.u32 %v272, 127
        %s274 = sadd.s32 %s28, %s29
        %s275 = smul.u32 %s274, 128
        %s276 = ssub.s32 128, %s275
        %v277 = vld [vmem:[%s220] sm:$0xff]
        %v278 = vld [vmem:[%s229] sm:$0xff]
        %vm279 = vcmp.gt.f32.partialorder %v278, 0.5
        %v280 = vsub.f32 1.0, %v277
        %v281 = vsel %vm279, %v277, %v280
        %v282 = vsub.f32 1.0, %v281
        %v283 = vmul.f32 %v282, %v282
        %v284 = vadd.f32 %v281, 1e-09
        %v285 = vlog2.pop %v284
        %v286 = vmul.f32 %v285, 0.6931472
        %v287 = vmul.f32 %v283, %v286
        %v288 = vstv %s276
        %vm289 = vcmp.lt.s32.totalorder %v273, %v288
        %v290 = vsel %vm289, %v287, 0.0
        %v291 = vadd.f32 %v290, 0.0
        %v292 = vld [vmem:[%s254] sm:$0xff]
        %v293 = vsub.f32 %v292, %v291
        %294 = vst [vmem:[%s254] sm:$0xff] %v293
        %s295 = sand.u32 %s119, 1
        %s296 = scalar_lea.sflag [#allocation4], %s295
        %s297 = sand.u32 %s119, 1
        %s298 = smul.addr %s297, 8
        %s299 = scalar_lea.vmem [#allocation7], %s298
        // Predicated region
        $region41: #{tpu_custom_call.1} parent=27 // pred_check
          %p300 = pneg %p129
        $region42: #{tpu_custom_call.1} parent=27 // pred_check_branch
          %302 = sbr.rel (%p300) target = $region44
        $region43: #{tpu_custom_call.1} parent=27 // pred_region
          %s304 = ssub.s32 128, 128
          %305 = vsyncadd %s296, %s304
          %s306 = smul.addr %s27, 2
          %s307 = sadd.s32 %s28, %s306
          %s308 = smul.addr %s307, 128
          %s309 = scalar_lea.hbm %s2, %s308
          %s311 = sshll.u32 %s299, 4
          %s312 = int_to_ptr.vmem [resolvable:$true] %s311
          %314 = dma.vmem_to_hbm [thread:$0]  %s312, 128, %s309, %s296
        $region44: #{tpu_custom_call.1} parent=27 // pred_fallthru
          _
      $region28: #{tpu_custom_call.1} parent=5 // pred_fallthru
        _
      %p315 = scmp.le.s32.totalorder 2, %s17
      // Predicated region
      $region45: #{tpu_custom_call.1} parent=5 // pred_check
        %p316 = pneg %p315
      $region46: #{tpu_custom_call.1} parent=5 // pred_check_branch
        %318 = sbr.rel (%p316) target = $region48
      $region47: #{tpu_custom_call.1} parent=5 // pred_region
        %s319 = ssub.s32 %s17, 2
        // Predicated region
        $region49: #{tpu_custom_call.1} parent=47 // pred_check
          %p320 = pneg %p135
        $region50: #{tpu_custom_call.1} parent=47 // pred_check_branch
          %322 = sbr.rel (%p320) target = $region52
        $region51: #{tpu_custom_call.1} parent=47 // pred_region
          %s323 = sand.u32 %s120, 1
          %s324 = scalar_lea.sflag [#allocation4], %s323
          %s325 = sand.u32 %s120, 1
          %s326 = smul.addr %s325, 8
          %s327 = scalar_lea.vmem [#allocation7], %s326
          %328 = dma.done %s324, 128
        $region52: #{tpu_custom_call.1} parent=47 // pred_fallthru
          _
      $region48: #{tpu_custom_call.1} parent=5 // pred_fallthru
        _
    $region6: #{tpu_custom_call.1} parent=1 // loop_footer
      %s21 = sadd.s32 1, %s17
    $region7: #{tpu_custom_call.1} parent=1 // loop_footer_branch
      %16 = sbr.rel target = $region3
    $region8: #{tpu_custom_call.1} parent=1 // loop_exit
      _
    %329 = vsyncpa [#allocation3], 1
    %s330 = scalar_lea.sflag [#allocation3], 1
    %331 = vsyncpa %s330, 1
    %332 = vsyncpa [#allocation6], 1
    %s333 = scalar_lea.sflag [#allocation6], 1
    %334 = vsyncpa %s333, 1
    %335 = vsyncpa [#allocation4], 1
    %s336 = scalar_lea.sflag [#allocation4], 1
    %337 = vsyncpa %s336, 1

</llo_original>
